<compile_context>
chip_gen: v7x
topology: tpu7x:2x2x1
jax: 0.10.0
libtpu: 0.0.40
codegen_flags: <defaults>
</compile_context>

<pallas_src>
import functools

import jax
import jax.numpy as jnp
from jax import lax
from jax.experimental import pallas as pl
from jax.experimental.pallas import tpu as pltpu

NEG_SLOPE = 0.2


def _leaky(v):
    return jnp.where(v > 0, v, NEG_SLOPE * v)


def resblock_kernel(x_ref, w1_ref, b1_ref, w2_ref, b2_ref, w3_ref, b3_ref,
                    out_ref, *, L, Bt):
    # x_ref block: (Bt, C, Lp), Lp = L rounded up to a multiple of 128.
    C = x_ref.shape[1]
    Lp = x_ref.shape[2]

    # Lane masks computed ONCE per grid step, reused by conv2 and conv3 taps.
    lane = lax.broadcasted_iota(jnp.int32, (C, Lp), 1)
    m_left = lane == 0            # conv left zero-pad (column j-1 at j == 0)
    m_right = lane >= L - 1       # conv right zero-pad + keeps lane-pad junk out

    # Tiny, grid-constant weights: load once per step, vreg-resident across rows.
    w1 = w1_ref[...]              # (C, C)   conv1 (k=1)
    b1 = b1_ref[...]              # (C, 1)
    w2 = w2_ref[...]              # (C, 3C)  conv2 taps concatenated along K
    b2 = b2_ref[...]
    w3 = w3_ref[...]              # (C, 3C)  conv3 taps concatenated along K
    b3 = b3_ref[...]

    def taps(v):
        # In-register k=3 halo: XLU rolls + edge masks (no padded buffer).
        #   roll(v, 1)[:, j]    == v[:, j-1]   (wrap at j=0 masked to zero-pad)
        #   roll(v, Lp-1)[:, j] == v[:, j+1]   (cols >= L-1 masked to zero-pad)
        v_m1 = jnp.where(m_left, 0.0, pltpu.roll(v, 1, axis=1))
        v_p1 = jnp.where(m_right, 0.0, pltpu.roll(v, Lp - 1, axis=1))
        return jnp.concatenate([v_m1, v, v_p1], axis=0)      # (3C, Lp)

    def one_row(i, carry):
        # All VPU math in f32; cast only at the HBM edges (load / final store).
        x = x_ref[i].astype(jnp.float32)                      # (C, Lp)

        # conv1 as its own K=C dot; conv2/conv3 as K=3C dots (no zero blocks).
        c1 = jnp.dot(w1, x, preferred_element_type=jnp.float32) + b1
        a = _leaky(x)                        # leaky(0)=0, padded cols stay 0
        c2 = jnp.dot(w2, taps(a), preferred_element_type=jnp.float32) + b2
        a2 = _leaky(c2)
        c3 = jnp.dot(w3, taps(a2), preferred_element_type=jnp.float32) + b3

        out_ref[i] = (c3 + c1).astype(out_ref.dtype)
        return carry

    # Bt rows per grid step; fori_loop bounds per-row live ranges and is fully
    # unrolled when short (LLO scheduler visibility).
    lax.fori_loop(0, Bt, one_row, None, unroll=(Bt <= 8))


def resblock_forward(x, params, *, io_dtype=None, bt=None):
    """ResBlock forward.  x: (B, Cin, L).

    io_dtype: dtype of the HBM streams (input cast + output dtype).  bf16
      halves the dominant HBM traffic of this memory-bound kernel; in-kernel
      math stays f32 regardless.
    bt: rows per grid step (default: auto-sized, see below).
    """
    B, Cin, L = x.shape
    w1, b1 = params["w1"], params["b1"]          # (Cout, Cin, 1), (Cout,)
    w2, b2 = params["w2"], params["b2"]          # (Cout, Cout, 3), (Cout,)
    w3, b3 = params["w3"], params["b3"]          # (Cout, Cout, 3), (Cout,)
    Cout = w1.shape[0]
    assert Cin == Cout, "ResBlock.forward requires in_channels == out_channels"

    io_dtype = jnp.dtype(x.dtype if io_dtype is None else io_dtype)
    itemsize = io_dtype.itemsize

    # Lane-dense length so output stores are unmasked, dense vst.
    Lp = pl.cdiv(L, 128) * 128
    xp = x.astype(io_dtype)
    if Lp != L:
        xp = jnp.pad(xp, ((0, 0), (0, 0), (0, Lp - L)))

    # ---- Batch tiling (the main perf lever) ----
    in_row = Cin * Lp * itemsize
    out_row = Cout * Lp * itemsize
    if bt is None:
        # (a) amortize per-step grid overhead: aim for >= ~512 KiB input/step.
        bt = max(1, (512 * 1024) // in_row)
        # (b) conservative VMEM budget: double-buffered in/out blocks plus
        #     ~16 rows-worth of f32 intermediates live at once.
        inter = 16 * Cout * Lp * 4
        budget = 12 * 1024 * 1024
        bt = min(bt, max(1, (budget - inter) // (2 * (in_row + out_row))))
        # (c) keep >= 2 grid steps so both v7x TensorCores get work.
        if B >= 2:
            bt = min(bt, pl.cdiv(B, 2))
        bt = max(1, min(bt, B))

    grid_b = pl.cdiv(B, bt)
    Bp = grid_b * bt
    if Bp != B:
        xp = jnp.pad(xp, ((0, Bp - B), (0, 0), (0, 0)))

    # Per-tap weight slabs (tiny; built once on the XLA side), math dtype f32.
    w1k = w1[:, :, 0].astype(jnp.float32)                                   # (Cout, Cin)
    w2k = jnp.concatenate([w2[:, :, 0], w2[:, :, 1], w2[:, :, 2]], 1).astype(jnp.float32)
    w3k = jnp.concatenate([w3[:, :, 0], w3[:, :, 1], w3[:, :, 2]], 1).astype(jnp.float32)
    b1k = b1[:, None].astype(jnp.float32)
    b2k = b2[:, None].astype(jnp.float32)
    b3k = b3[:, None].astype(jnp.float32)

    const = lambda b: (0, 0)   # grid-constant blocks: pipeline does not re-fetch
    kernel = functools.partial(resblock_kernel, L=L, Bt=bt)
    out = pl.pallas_call(
        kernel,
        out_shape=jax.ShapeDtypeStruct((Bp, Cout, Lp), io_dtype),
        grid=(grid_b,),
        in_specs=[
            pl.BlockSpec((bt, Cin, Lp), lambda b: (b, 0, 0)),
            pl.BlockSpec((Cout, Cin), const),
            pl.BlockSpec((Cout, 1), const),
            pl.BlockSpec((Cout, 3 * Cout), const),
            pl.BlockSpec((Cout, 1), const),
            pl.BlockSpec((Cout, 3 * Cout), const),
            pl.BlockSpec((Cout, 1), const),
        ],
        out_specs=pl.BlockSpec((bt, Cout, Lp), lambda b: (b, 0, 0)),
        compiler_params=pltpu.CompilerParams(
            dimension_semantics=("parallel",),
            vmem_limit_bytes=32 * 1024 * 1024),
    )(xp, w1k, b1k, w2k, b2k, w3k, b3k)

    if Bp != B or Lp != L:
        out = out[:B, :, :L]
    return out


# ---------------- pure-JAX reference (for correctness check) ----------------
def _conv1d_ref(x, w, b, padding):
    out = lax.conv_general_dilated(
        x, w, window_strides=(1,), padding=[(padding, padding)],
        dimension_numbers=("NCH", "OIH", "NCH"))
    return out + b[None, :, None]


def resblock_ref(x, params):
    c1 = _conv1d_ref(x, params["w1"], params["b1"], 0)
    a = _leaky(x)
    c2 = _conv1d_ref(a, params["w2"], params["b2"], 1)
    c3 = _conv1d_ref(_leaky(c2), params["w3"], params["b3"], 1)
    return c3 + c1


def init_params(key, cin, cout):
    """Deterministic init mimicking PyTorch Conv1d default (uniform ±1/sqrt(fan_in))."""
    ks = jax.random.split(key, 6)

    def u(k, shape, fan_in):
        bound = 1.0 / jnp.sqrt(fan_in)
        return jax.random.uniform(k, shape, jnp.float32, -bound, bound)

    return {
        "w1": u(ks[0], (cout, cin, 1), cin * 1),
        "b1": u(ks[1], (cout,), cin * 1),
        "w2": u(ks[2], (cout, cout, 3), cout * 3),
        "b2": u(ks[3], (cout,), cout * 3),
        "w3": u(ks[4], (cout, cout, 3), cout * 3),
        "b3": u(ks[5], (cout,), cout * 3),
    }


if __name__ == "__main__":
    key = jax.random.PRNGKey(0)
    kp, kx1, kx2, kx3 = jax.random.split(key, 4)
    C = 8  # in_channels == out_channels (required by the module's forward)
    params = init_params(kp, C, C)

    # 1) f32 path, lane-aligned L (tight check).
    x1 = jax.random.normal(kx1, (2, C, 128), jnp.float32)
    o1 = jax.block_until_ready(resblock_forward(x1, params))
    r1 = resblock_ref(x1, params)
    assert o1.shape == x1.shape, o1.shape
    assert jnp.allclose(o1, r1, atol=1e-4, rtol=1e-4), float(jnp.max(jnp.abs(o1 - r1)))

    # 2) multi-row-per-step + batch pad + lane pad: B=5 -> Bt=3, grid=2, Bp=6;
    #    L=100 -> Lp=128 (tight check).
    x2 = jax.random.normal(kx2, (5, C, 100), jnp.float32)
    o2 = jax.block_until_ready(resblock_forward(x2, params))
    r2 = resblock_ref(x2, params)
    assert o2.shape == x2.shape, o2.shape
    assert jnp.allclose(o2, r2, atol=1e-4, rtol=1e-4), float(jnp.max(jnp.abs(o2 - r2)))

    # 3) bf16 HBM I/O path (memory-bound win); in-kernel math stays f32.
    #    Compare against the reference evaluated on the same quantized input.
    x3 = jax.random.normal(kx3, (4, C, 128), jnp.float32)
    o3 = jax.block_until_ready(resblock_forward(x3, params, io_dtype=jnp.bfloat16))
    r3 = resblock_ref(x3.astype(jnp.bfloat16).astype(jnp.float32), params)
    assert o3.shape == x3.shape and o3.dtype == jnp.bfloat16
    assert jnp.allclose(o3.astype(jnp.float32), r3, atol=3e-2, rtol=3e-2), \
        float(jnp.max(jnp.abs(o3.astype(jnp.float32) - r3)))

    print("KERNEL_OK")
</pallas_src>

<mosaic_0001>
module attributes {stable_mosaic.version = 11 : i64} {
  func.func @resblock_kernel(%arg0: i32, %arg1: memref<1x8x128xf32, #tpu.memory_space<vmem>>, %arg2: memref<8x8xf32, #tpu.memory_space<vmem>>, %arg3: memref<8x1xf32, #tpu.memory_space<vmem>>, %arg4: memref<8x24xf32, #tpu.memory_space<vmem>>, %arg5: memref<8x1xf32, #tpu.memory_space<vmem>>, %arg6: memref<8x24xf32, #tpu.memory_space<vmem>>, %arg7: memref<8x1xf32, #tpu.memory_space<vmem>>, %arg8: memref<1x8x128xf32, #tpu.memory_space<vmem>>) attributes {dimension_semantics = [#tpu.dimension_semantics<parallel>], iteration_bounds = array<i64: 2>, scalar_prefetch = 0 : i64, scratch_operands = 0 : i64, tpu.core_type = #tpu.core_type<tc>, window_params = [{transform_indices = @transform_0, window_bounds = array<i64: 1, 8, 128>}, {pipeline_mode = #tpu.pipeline_mode<synchronous>, transform_indices = @transform_1, window_bounds = array<i64: 8, 8>}, {pipeline_mode = #tpu.pipeline_mode<synchronous>, transform_indices = @transform_2, window_bounds = array<i64: 8, 1>}, {pipeline_mode = #tpu.pipeline_mode<synchronous>, transform_indices = @transform_3, window_bounds = array<i64: 8, 24>}, {pipeline_mode = #tpu.pipeline_mode<synchronous>, transform_indices = @transform_4, window_bounds = array<i64: 8, 1>}, {pipeline_mode = #tpu.pipeline_mode<synchronous>, transform_indices = @transform_5, window_bounds = array<i64: 8, 24>}, {pipeline_mode = #tpu.pipeline_mode<synchronous>, transform_indices = @transform_6, window_bounds = array<i64: 8, 1>}, {transform_indices = @transform_7, window_bounds = array<i64: 1, 8, 128>}]} {
    %0 = tpu.iota {dimensions = array<i32: 1>} : vector<8x128xi32>
    %c0_i32 = arith.constant 0 : i32
    %1 = vector.broadcast %c0_i32 : i32 to vector<8x128xi32>
    %2 = arith.cmpi eq, %0, %1 : vector<8x128xi32>
    %c127_i32 = arith.constant 127 : i32
    %3 = vector.broadcast %c127_i32 : i32 to vector<8x128xi32>
    %4 = arith.cmpi sge, %0, %3 : vector<8x128xi32>
    %c0 = arith.constant 0 : index
    %c0_0 = arith.constant 0 : index
    %5 = vector.load %arg2[%c0, %c0_0] : memref<8x8xf32, #tpu.memory_space<vmem>>, vector<8x8xf32>
    %c0_1 = arith.constant 0 : index
    %c0_2 = arith.constant 0 : index
    %6 = vector.load %arg3[%c0_1, %c0_2] : memref<8x1xf32, #tpu.memory_space<vmem>>, vector<8x1xf32>
    %c0_3 = arith.constant 0 : index
    %c0_4 = arith.constant 0 : index
    %7 = vector.load %arg4[%c0_3, %c0_4] : memref<8x24xf32, #tpu.memory_space<vmem>>, vector<8x24xf32>
    %c0_5 = arith.constant 0 : index
    %c0_6 = arith.constant 0 : index
    %8 = vector.load %arg5[%c0_5, %c0_6] : memref<8x1xf32, #tpu.memory_space<vmem>>, vector<8x1xf32>
    %c0_7 = arith.constant 0 : index
    %c0_8 = arith.constant 0 : index
    %9 = vector.load %arg6[%c0_7, %c0_8] : memref<8x24xf32, #tpu.memory_space<vmem>>, vector<8x24xf32>
    %c0_9 = arith.constant 0 : index
    %c0_10 = arith.constant 0 : index
    %10 = vector.load %arg7[%c0_9, %c0_10] : memref<8x1xf32, #tpu.memory_space<vmem>>, vector<8x1xf32>
    %c0_i32_11 = arith.constant 0 : i32
    %11 = arith.index_cast %c0_i32_11 : i32 to index
    %c0_12 = arith.constant 0 : index
    %c0_13 = arith.constant 0 : index
    %12 = vector.load %arg1[%11, %c0_12, %c0_13] : memref<1x8x128xf32, #tpu.memory_space<vmem>>, vector<1x8x128xf32>
    %13 = vector.shape_cast %12 : vector<1x8x128xf32> to vector<8x128xf32>
    %cst = arith.constant dense<0.000000e+00> : vector<8x128xf32>
    %14 = tpu.matmul %5, %13, %cst {dimension_numbers = #tpu.dot_dimension_numbers<[1], [0], [0], [1], [0, 0, 1, 1], [], []>} : vector<8x8xf32>, vector<8x128xf32>, vector<8x128xf32> -> vector<8x128xf32>
    %15 = vector.broadcast %6 : vector<8x1xf32> to vector<8x128xf32>
    %16 = arith.addf %14, %15 : vector<8x128xf32>
    %cst_14 = arith.constant 0.000000e+00 : f32
    %17 = vector.broadcast %cst_14 : f32 to vector<8x128xf32>
    %18 = arith.cmpf ogt, %13, %17 : vector<8x128xf32>
    %cst_15 = arith.constant 2.000000e-01 : f32
    %19 = vector.broadcast %cst_15 : f32 to vector<8x128xf32>
    %20 = arith.mulf %19, %13 : vector<8x128xf32>
    %21 = arith.select %18, %13, %20 : vector<8x128xi1>, vector<8x128xf32>
    %c1_i32 = arith.constant 1 : i32
    %22 = tpu.dynamic_rotate %21 by %c1_i32 dim 1 : vector<8x128xf32>, i32 -> vector<8x128xf32>
    %cst_16 = arith.constant 0.000000e+00 : f32
    %23 = vector.broadcast %cst_16 : f32 to vector<8x128xf32>
    %24 = arith.select %2, %23, %22 : vector<8x128xi1>, vector<8x128xf32>
    %c127_i32_17 = arith.constant 127 : i32
    %25 = tpu.dynamic_rotate %21 by %c127_i32_17 dim 1 : vector<8x128xf32>, i32 -> vector<8x128xf32>
    %cst_18 = arith.constant 0.000000e+00 : f32
    %26 = vector.broadcast %cst_18 : f32 to vector<8x128xf32>
    %27 = arith.select %4, %26, %25 : vector<8x128xi1>, vector<8x128xf32>
    %28 = tpu.concatenate %24, %21, %27 in 0 : vector<8x128xf32>, vector<8x128xf32>, vector<8x128xf32> -> vector<24x128xf32>
    %cst_19 = arith.constant dense<0.000000e+00> : vector<8x128xf32>
    %29 = tpu.matmul %7, %28, %cst_19 {dimension_numbers = #tpu.dot_dimension_numbers<[1], [0], [0], [1], [0, 0, 1, 1], [], []>} : vector<8x24xf32>, vector<24x128xf32>, vector<8x128xf32> -> vector<8x128xf32>
    %30 = vector.broadcast %8 : vector<8x1xf32> to vector<8x128xf32>
    %31 = arith.addf %29, %30 : vector<8x128xf32>
    %cst_20 = arith.constant 0.000000e+00 : f32
    %32 = vector.broadcast %cst_20 : f32 to vector<8x128xf32>
    %33 = arith.cmpf ogt, %31, %32 : vector<8x128xf32>
    %cst_21 = arith.constant 2.000000e-01 : f32
    %34 = vector.broadcast %cst_21 : f32 to vector<8x128xf32>
    %35 = arith.mulf %34, %31 : vector<8x128xf32>
    %36 = arith.select %33, %31, %35 : vector<8x128xi1>, vector<8x128xf32>
    %c1_i32_22 = arith.constant 1 : i32
    %37 = tpu.dynamic_rotate %36 by %c1_i32_22 dim 1 : vector<8x128xf32>, i32 -> vector<8x128xf32>
    %cst_23 = arith.constant 0.000000e+00 : f32
    %38 = vector.broadcast %cst_23 : f32 to vector<8x128xf32>
    %39 = arith.select %2, %38, %37 : vector<8x128xi1>, vector<8x128xf32>
    %c127_i32_24 = arith.constant 127 : i32
    %40 = tpu.dynamic_rotate %36 by %c127_i32_24 dim 1 : vector<8x128xf32>, i32 -> vector<8x128xf32>
    %cst_25 = arith.constant 0.000000e+00 : f32
    %41 = vector.broadcast %cst_25 : f32 to vector<8x128xf32>
    %42 = arith.select %4, %41, %40 : vector<8x128xi1>, vector<8x128xf32>
    %43 = tpu.concatenate %39, %36, %42 in 0 : vector<8x128xf32>, vector<8x128xf32>, vector<8x128xf32> -> vector<24x128xf32>
    %cst_26 = arith.constant dense<0.000000e+00> : vector<8x128xf32>
    %44 = tpu.matmul %9, %43, %cst_26 {dimension_numbers = #tpu.dot_dimension_numbers<[1], [0], [0], [1], [0, 0, 1, 1], [], []>} : vector<8x24xf32>, vector<24x128xf32>, vector<8x128xf32> -> vector<8x128xf32>
    %45 = vector.broadcast %10 : vector<8x1xf32> to vector<8x128xf32>
    %46 = arith.addf %44, %45 : vector<8x128xf32>
    %47 = arith.addf %46, %16 : vector<8x128xf32>
    %48 = arith.index_cast %c0_i32_11 : i32 to index
    %c0_27 = arith.constant 0 : index
    %c0_28 = arith.constant 0 : index
    %49 = vector.load %arg8[%48, %c0_27, %c0_28] : memref<1x8x128xf32, #tpu.memory_space<vmem>>, vector<1x8x128xf32>
    %50 = vector.shape_cast %49 : vector<1x8x128xf32> to vector<8x128xf32>
    %51 = vector.shape_cast %47 : vector<8x128xf32> to vector<1x8x128xf32>
    tpu.vector_store %arg8[%48, %c0_27, %c0_28], %51 {strides = array<i32>} : memref<1x8x128xf32, #tpu.memory_space<vmem>>, vector<1x8x128xf32>,
    %c1_i32_29 = arith.constant 1 : i32
    return
  }
  func.func @transform_0(%arg0: i32) -> (i32, i32, i32) {
    %c0_i32 = arith.constant 0 : i32
    %c0_i32_0 = arith.constant 0 : i32
    %c0_i32_1 = arith.constant 0 : i32
    return %arg0, %c0_i32, %c0_i32_0 : i32, i32, i32
  }
  func.func @transform_1(%arg0: i32) -> (i32, i32) {
    %c0_i32 = arith.constant 0 : i32
    %c0_i32_0 = arith.constant 0 : i32
    %c0_i32_1 = arith.constant 0 : i32
    return %c0_i32, %c0_i32_0 : i32, i32
  }
  func.func @transform_2(%arg0: i32) -> (i32, i32) {
    %c0_i32 = arith.constant 0 : i32
    %c0_i32_0 = arith.constant 0 : i32
    %c0_i32_1 = arith.constant 0 : i32
    return %c0_i32, %c0_i32_0 : i32, i32
  }
  func.func @transform_3(%arg0: i32) -> (i32, i32) {
    %c0_i32 = arith.constant 0 : i32
    %c0_i32_0 = arith.constant 0 : i32
    %c0_i32_1 = arith.constant 0 : i32
    return %c0_i32, %c0_i32_0 : i32, i32
  }
  func.func @transform_4(%arg0: i32) -> (i32, i32) {
    %c0_i32 = arith.constant 0 : i32
    %c0_i32_0 = arith.constant 0 : i32
    %c0_i32_1 = arith.constant 0 : i32
    return %c0_i32, %c0_i32_0 : i32, i32
  }
  func.func @transform_5(%arg0: i32) -> (i32, i32) {
    %c0_i32 = arith.constant 0 : i32
    %c0_i32_0 = arith.constant 0 : i32
    %c0_i32_1 = arith.constant 0 : i32
    return %c0_i32, %c0_i32_0 : i32, i32
  }
  func.func @transform_6(%arg0: i32) -> (i32, i32) {
    %c0_i32 = arith.constant 0 : i32
    %c0_i32_0 = arith.constant 0 : i32
    %c0_i32_1 = arith.constant 0 : i32
    return %c0_i32, %c0_i32_0 : i32, i32
  }
  func.func @transform_7(%arg0: i32) -> (i32, i32, i32) {
    %c0_i32 = arith.constant 0 : i32
    %c0_i32_0 = arith.constant 0 : i32
    %c0_i32_1 = arith.constant 0 : i32
    return %arg0, %c0_i32, %c0_i32_0 : i32, i32, i32
  }
}

</mosaic_0001>

<llo_original>
// kernel: tpu_custom_call.1
$region0: #{tpu_custom_call.1}
  #allocation0 [shape = 'u32[]', space=smem, size = 0x4, offset = 0x4, fixed_abs, tag = 'smem constant byte address 0x4 - core index']
  #allocation1 [shape = 'u32[144,128]{1,0:T(1,128)}', space=vmem, size = 0x12000, scoped, tag = 'internal scratch']
  %s0 = inlined_call_operand.vmem [shape: f32[2,8,128], index: 0, kind: input, shape index: {}]
  %s1 = inlined_call_operand.vmem [shape: f32[8,8], index: 1, kind: input, shape index: {}]
  %s2 = inlined_call_operand.vmem [shape: f32[8,1], index: 2, kind: input, shape index: {}]
  %s3 = inlined_call_operand.vmem [shape: f32[8,24], index: 3, kind: input, shape index: {}]
  %s4 = inlined_call_operand.vmem [shape: f32[8,1], index: 4, kind: input, shape index: {}]
  %s5 = inlined_call_operand.vmem [shape: f32[8,24], index: 5, kind: input, shape index: {}]
  %s6 = inlined_call_operand.vmem [shape: f32[8,1], index: 6, kind: input, shape index: {}]
  %s7 = inlined_call_operand.hbm [shape: f32[2,8,128], index: 7, kind: output, shape index: {}]
  %s8 = sld [smem:[#allocation0]]
  $region61: #{tpu_custom_call.1} parent=0
    _
  %s10 = ssub.s32 1, %s8
  %s11 = scalar_select 0, %s10, %s8
  $region1: #{tpu_custom_call.1} parent=0
    #allocation2 [shape = 'u8[8192]{0}', space=vmem, size = 0x2000, scoped, tag = 'output window, operand 0']
    #allocation3 [shape = 's32[2]{0}', space=sflag, size = 0x8, scoped, tag = 'scoped memory for tpu_custom_call.1']
    %12 = vsyncpa [#allocation3], 0
    %s13 = scalar_lea.sflag [#allocation3], 1
    %14 = vsyncpa %s13, 0
    loop: start=0, step=1, limit=4
    $region2: #{tpu_custom_call.1} parent=1 // loop_pre_header
      _
    $region3: #{tpu_custom_call.1} parent=1 // loop_header
      %s16 = sphi 0, %s20
      %p17 = scmp.ge.s32.totalorder %s16, 4
      %s26 = sphi 0, %s28
      %s29 = sphi 0, %s26
      %s30 = sphi 0, %s29
      %s46 = sphi 0, %s30
      %s50 = sphi 0, %s50
      %s52 = sphi 0, %s50
      %s53 = sphi 0, %s52
      %s67 = sphi 0, %s53
      %s71 = sphi 0, %s71
      %s73 = sphi 0, %s71
      %s74 = sphi 0, %s73
      %s88 = sphi 0, %s74
      %s92 = sphi 0, %s92
      %s94 = sphi 0, %s92
      %s95 = sphi 0, %s94
      %s109 = sphi 0, %s95
      %s113 = sphi 0, %s113
      %s115 = sphi 0, %s113
      %s116 = sphi 0, %s115
      %s130 = sphi 0, %s116
      %s134 = sphi 0, %s134
      %s136 = sphi 0, %s134
      %s137 = sphi 0, %s136
      %s151 = sphi 0, %s137
      %s155 = sphi 0, %s155
      %s157 = sphi 0, %s155
      %s158 = sphi 0, %s157
      %s172 = sphi 0, %s158
      %s178 = sphi 0, %s180
      %s181 = sphi 0, %s178
      %s182 = sphi 0, %s181
      %s198 = sphi 0, %s182
    $region4: #{tpu_custom_call.1} parent=1 // loop_header_branch
      %19 = sbr.rel (%p17) target = $region8
    $region5: #{tpu_custom_call.1} parent=1 // loop_body
      %s21 = ssub.s32 %s16, 1
      %s22 = ssub.s32 %s16, 2
      %s23 = sadd.s32 %s16, 1
      %s24 = ssub.s32 %s16, %s23
      %p25 = scmp.eq.s32.totalorder %s24, 0
      %s27 = sadd.s32 %s26, 1
      %s28 = scalar_select %p25, %s26, %s27
      %p31 = pneg %p25
      %p32 = scmp.eq.s32.totalorder %s16, 1
      %p33 = por %p31, %p32
      %p34 = scmp.ne.s32.totalorder %s26, %s29
      %p35 = scmp.eq.s32.totalorder %s16, 0
      %p36 = por %p34, %p35
      %p37 = scmp.ne.s32.totalorder %s26, %s29
      %p38 = scmp.eq.s32.totalorder %s21, 1
      %p39 = por %p37, %p38
      %p40 = scmp.ne.s32.totalorder %s29, %s30
      %p41 = scmp.eq.s32.totalorder %s21, 0
      %p42 = por %p40, %p41
      %p43 = scmp.ne.s32.totalorder %s29, %s30
      %p44 = scmp.eq.s32.totalorder %s22, 1
      %p45 = por %p43, %p44
      %p47 = scmp.ne.s32.totalorder %s30, %s46
      %p48 = scmp.eq.s32.totalorder %s22, 0
      %p49 = por %p47, %p48
      %s51 = sadd.s32 %s50, 1
      %p54 = scmp.eq.s32.totalorder %s16, 1
      %p55 = scmp.ne.s32.totalorder %s50, %s52
      %p56 = scmp.eq.s32.totalorder %s16, 0
      %p57 = por %p55, %p56
      %p58 = scmp.ne.s32.totalorder %s50, %s52
      %p59 = scmp.eq.s32.totalorder %s21, 1
      %p60 = por %p58, %p59
      %p61 = scmp.ne.s32.totalorder %s52, %s53
      %p62 = scmp.eq.s32.totalorder %s21, 0
      %p63 = por %p61, %p62
      %p64 = scmp.ne.s32.totalorder %s52, %s53
      %p65 = scmp.eq.s32.totalorder %s22, 1
      %p66 = por %p64, %p65
      %p68 = scmp.ne.s32.totalorder %s53, %s67
      %p69 = scmp.eq.s32.totalorder %s22, 0
      %p70 = por %p68, %p69
      %s72 = sadd.s32 %s71, 1
      %p75 = scmp.eq.s32.totalorder %s16, 1
      %p76 = scmp.ne.s32.totalorder %s71, %s73
      %p77 = scmp.eq.s32.totalorder %s16, 0
      %p78 = por %p76, %p77
      %p79 = scmp.ne.s32.totalorder %s71, %s73
      %p80 = scmp.eq.s32.totalorder %s21, 1
      %p81 = por %p79, %p80
      %p82 = scmp.ne.s32.totalorder %s73, %s74
      %p83 = scmp.eq.s32.totalorder %s21, 0
      %p84 = por %p82, %p83
      %p85 = scmp.ne.s32.totalorder %s73, %s74
      %p86 = scmp.eq.s32.totalorder %s22, 1
      %p87 = por %p85, %p86
      %p89 = scmp.ne.s32.totalorder %s74, %s88
      %p90 = scmp.eq.s32.totalorder %s22, 0
      %p91 = por %p89, %p90
      %s93 = sadd.s32 %s92, 1
      %p96 = scmp.eq.s32.totalorder %s16, 1
      %p97 = scmp.ne.s32.totalorder %s92, %s94
      %p98 = scmp.eq.s32.totalorder %s16, 0
      %p99 = por %p97, %p98
      %p100 = scmp.ne.s32.totalorder %s92, %s94
      %p101 = scmp.eq.s32.totalorder %s21, 1
      %p102 = por %p100, %p101
      %p103 = scmp.ne.s32.totalorder %s94, %s95
      %p104 = scmp.eq.s32.totalorder %s21, 0
      %p105 = por %p103, %p104
      %p106 = scmp.ne.s32.totalorder %s94, %s95
      %p107 = scmp.eq.s32.totalorder %s22, 1
      %p108 = por %p106, %p107
      %p110 = scmp.ne.s32.totalorder %s95, %s109
      %p111 = scmp.eq.s32.totalorder %s22, 0
      %p112 = por %p110, %p111
      %s114 = sadd.s32 %s113, 1
      %p117 = scmp.eq.s32.totalorder %s16, 1
      %p118 = scmp.ne.s32.totalorder %s113, %s115
      %p119 = scmp.eq.s32.totalorder %s16, 0
      %p120 = por %p118, %p119
      %p121 = scmp.ne.s32.totalorder %s113, %s115
      %p122 = scmp.eq.s32.totalorder %s21, 1
      %p123 = por %p121, %p122
      %p124 = scmp.ne.s32.totalorder %s115, %s116
      %p125 = scmp.eq.s32.totalorder %s21, 0
      %p126 = por %p124, %p125
      %p127 = scmp.ne.s32.totalorder %s115, %s116
      %p128 = scmp.eq.s32.totalorder %s22, 1
      %p129 = por %p127, %p128
      %p131 = scmp.ne.s32.totalorder %s116, %s130
      %p132 = scmp.eq.s32.totalorder %s22, 0
      %p133 = por %p131, %p132
      %s135 = sadd.s32 %s134, 1
      %p138 = scmp.eq.s32.totalorder %s16, 1
      %p139 = scmp.ne.s32.totalorder %s134, %s136
      %p140 = scmp.eq.s32.totalorder %s16, 0
      %p141 = por %p139, %p140
      %p142 = scmp.ne.s32.totalorder %s134, %s136
      %p143 = scmp.eq.s32.totalorder %s21, 1
      %p144 = por %p142, %p143
      %p145 = scmp.ne.s32.totalorder %s136, %s137
      %p146 = scmp.eq.s32.totalorder %s21, 0
      %p147 = por %p145, %p146
      %p148 = scmp.ne.s32.totalorder %s136, %s137
      %p149 = scmp.eq.s32.totalorder %s22, 1
      %p150 = por %p148, %p149
      %p152 = scmp.ne.s32.totalorder %s137, %s151
      %p153 = scmp.eq.s32.totalorder %s22, 0
      %p154 = por %p152, %p153
      %s156 = sadd.s32 %s155, 1
      %p159 = scmp.eq.s32.totalorder %s16, 1
      %p160 = scmp.ne.s32.totalorder %s155, %s157
      %p161 = scmp.eq.s32.totalorder %s16, 0
      %p162 = por %p160, %p161
      %p163 = scmp.ne.s32.totalorder %s155, %s157
      %p164 = scmp.eq.s32.totalorder %s21, 1
      %p165 = por %p163, %p164
      %p166 = scmp.ne.s32.totalorder %s157, %s158
      %p167 = scmp.eq.s32.totalorder %s21, 0
      %p168 = por %p166, %p167
      %p169 = scmp.ne.s32.totalorder %s157, %s158
      %p170 = scmp.eq.s32.totalorder %s22, 1
      %p171 = por %p169, %p170
      %p173 = scmp.ne.s32.totalorder %s158, %s172
      %p174 = scmp.eq.s32.totalorder %s22, 0
      %p175 = por %p173, %p174
      %s176 = ssub.s32 %s16, %s23
      %p177 = scmp.eq.s32.totalorder %s176, 0
      %s179 = sadd.s32 %s178, 1
      %s180 = scalar_select %p177, %s178, %s179
      %p183 = pneg %p177
      %p184 = scmp.eq.s32.totalorder %s16, 1
      %p185 = por %p183, %p184
      %p186 = scmp.ne.s32.totalorder %s178, %s181
      %p187 = scmp.eq.s32.totalorder %s16, 0
      %p188 = por %p186, %p187
      %p189 = scmp.ne.s32.totalorder %s178, %s181
      %p190 = scmp.eq.s32.totalorder %s21, 1
      %p191 = por %p189, %p190
      %p192 = scmp.ne.s32.totalorder %s181, %s182
      %p193 = scmp.eq.s32.totalorder %s21, 0
      %p194 = por %p192, %p193
      %p195 = scmp.ne.s32.totalorder %s181, %s182
      %p196 = scmp.eq.s32.totalorder %s22, 1
      %p197 = por %p195, %p196
      %p199 = scmp.ne.s32.totalorder %s182, %s198
      %p200 = scmp.eq.s32.totalorder %s22, 0
      %p201 = por %p199, %p200
      %p202 = scmp.le.s32.totalorder 1, %s16
      %p203 = scmp.lt.s32.totalorder %s16, 3
      %p204 = pnand %p202, %p203
      %p205 = pneg %p204
      // Predicated region
      $region9: #{tpu_custom_call.1} parent=5 // pred_check
        _
      $region10: #{tpu_custom_call.1} parent=5 // pred_check_branch
        %207 = sbr.rel (%p204) target = $region12
      $region11: #{tpu_custom_call.1} parent=5 // pred_region
        %s208 = ssub.s32 %s16, 1
        // Predicated region
        $region13: #{tpu_custom_call.1} parent=11 // pred_check
          %p209 = pneg %p63
        $region14: #{tpu_custom_call.1} parent=11 // pred_check_branch
          %211 = sbr.rel (%p209) target = $region16
        $region15: #{tpu_custom_call.1} parent=11 // pred_region
          _
        $region16: #{tpu_custom_call.1} parent=11 // pred_fallthru
          _
        // Predicated region
        $region17: #{tpu_custom_call.1} parent=11 // pred_check
          %p212 = pneg %p84
        $region18: #{tpu_custom_call.1} parent=11 // pred_check_branch
          %214 = sbr.rel (%p212) target = $region20
        $region19: #{tpu_custom_call.1} parent=11 // pred_region
          _
        $region20: #{tpu_custom_call.1} parent=11 // pred_fallthru
          _
        // Predicated region
        $region21: #{tpu_custom_call.1} parent=11 // pred_check
          %p215 = pneg %p105
        $region22: #{tpu_custom_call.1} parent=11 // pred_check_branch
          %217 = sbr.rel (%p215) target = $region24
        $region23: #{tpu_custom_call.1} parent=11 // pred_region
          _
        $region24: #{tpu_custom_call.1} parent=11 // pred_fallthru
          _
        // Predicated region
        $region25: #{tpu_custom_call.1} parent=11 // pred_check
          %p218 = pneg %p126
        $region26: #{tpu_custom_call.1} parent=11 // pred_check_branch
          %220 = sbr.rel (%p218) target = $region28
        $region27: #{tpu_custom_call.1} parent=11 // pred_region
          _
        $region28: #{tpu_custom_call.1} parent=11 // pred_fallthru
          _
        // Predicated region
        $region29: #{tpu_custom_call.1} parent=11 // pred_check
          %p221 = pneg %p147
        $region30: #{tpu_custom_call.1} parent=11 // pred_check_branch
          %223 = sbr.rel (%p221) target = $region32
        $region31: #{tpu_custom_call.1} parent=11 // pred_region
          _
        $region32: #{tpu_custom_call.1} parent=11 // pred_fallthru
          _
        // Predicated region
        $region33: #{tpu_custom_call.1} parent=11 // pred_check
          %p224 = pneg %p168
        $region34: #{tpu_custom_call.1} parent=11 // pred_check_branch
          %226 = sbr.rel (%p224) target = $region36
        $region35: #{tpu_custom_call.1} parent=11 // pred_region
          _
        $region36: #{tpu_custom_call.1} parent=11 // pred_fallthru
          _
      $region12: #{tpu_custom_call.1} parent=5 // pred_fallthru
        _
      %p227 = scmp.lt.s32.totalorder %s16, 2
      // Predicated region
      $region37: #{tpu_custom_call.1} parent=5 // pred_check
        %p228 = pneg %p227
      $region38: #{tpu_custom_call.1} parent=5 // pred_check_branch
        %230 = sbr.rel (%p228) target = $region40
      $region39: #{tpu_custom_call.1} parent=5 // pred_region
        // Predicated region
        $region41: #{tpu_custom_call.1} parent=39 // pred_check
          %p231 = pneg %p36
        $region42: #{tpu_custom_call.1} parent=39 // pred_check_branch
          %233 = sbr.rel (%p231) target = $region44
        $region43: #{tpu_custom_call.1} parent=39 // pred_region
          %p234 = scmp.lt.s32.totalorder %s16, 1
          %s235 = scalar_select %p234, %s16, 1
          %s236 = smul.addr %s235, 8
          %s237 = scalar_lea.vmem %s0, %s236
        $region44: #{tpu_custom_call.1} parent=39 // pred_fallthru
          _
      $region40: #{tpu_custom_call.1} parent=5 // pred_fallthru
        _
      %p238 = scmp.le.s32.totalorder 1, %s16
      %p239 = scmp.lt.s32.totalorder %s16, 3
      %p240 = pnand %p238, %p239
      %p241 = pneg %p240
      // Predicated region
      $region45: #{tpu_custom_call.1} parent=5 // pred_check
        _
      $region46: #{tpu_custom_call.1} parent=5 // pred_check_branch
        %243 = sbr.rel (%p240) target = $region48
      $region47: #{tpu_custom_call.1} parent=5 // pred_region
        %s244 = ssub.s32 %s16, 1
        %p245 = scmp.lt.s32.totalorder %s21, 1
        %s246 = scalar_select %p245, %s21, 1
        %s247 = smul.addr %s246, 8
        %s248 = scalar_lea.vmem %s0, %s247
        %p249 = pneg %p42
        %p250 = pneg %p39
        %p251 = pneg %p63
        %p252 = pneg %p60
        %p253 = pneg %p84
        %p254 = pneg %p81
        %p255 = pneg %p105
        %p256 = pneg %p102
        %p257 = pneg %p126
        %p258 = pneg %p123
        %p259 = pneg %p147
        %p260 = pneg %p144
        %p261 = pneg %p168
        %p262 = pneg %p165
        %p263 = pneg %p194
        %p264 = pneg %p191
        %s265 = sand.u32 %s181, 1
        %s266 = scalar_lea.sflag [#allocation3], %s265
        %s267 = sand.u32 %s181, 1
        %s268 = smul.addr %s267, 8
        %s269 = scalar_lea.vmem [#allocation2], %s268
        %p270 = scmp.lt.s32.totalorder %s21, 1
        %s271 = scalar_select %p270, %s21, 1
        %s272 = smul.addr %s271, 8
        %s273 = scalar_lea.vmem %s0, %s272
        %v274 = vlaneseq
        %v275 = vand.u32 %v274, 127
        %vm276 = vcmp.eq.s32.totalorder %v275, 0
        %vm277 = vcmp.ge.s32.totalorder %v275, 127
        %v278 = vld [vmem:[%s1] sm:$0xff]
        %v279 = vld [vmem:[%s2] sm:$0xff]
        %v280 = vld [vmem:[%s3] sm:$0xff]
        %v281 = vld [vmem:[%s4] sm:$0xff]
        %v282 = vld [vmem:[%s5] sm:$0xff]
        %v283 = vld [vmem:[%s6] sm:$0xff]
        %v284 = vld [vmem:[%s273] sm:$0xff]
        %286 = vset.pattern.permute.xlu0 0
        %287 = vperm.xlu0 %286, %v279
        %v288 = vpop.permute.xlu0 %287
        %vm290 = vcmask 64512
        %v292 = vsel %vm290, %v278, 0
        %294 = vmatprep.subr.mxu0 0.0
        %295 = vmatpush1.msra.mxu0 %v284
        %296 = vmatprep.subr.mxu0 0.0
        %297 = vmatpush1.msra.mxu0 0.0
        %298 = vmatprep.subr.mxu0 0.0
        %299 = vmatpush1.msra.mxu0 0.0
        %300 = vmatprep.subr.mxu0 0.0
        %301 = vmatpush1.msra.mxu0 0.0
        %302 = vmatprep.subr.mxu0 0.0
        %303 = vmatpush1.msra.mxu0 0.0
        %304 = vmatprep.subr.mxu0 0.0
        %305 = vmatpush1.msra.mxu0 0.0
        %306 = vmatprep.subr.mxu0 0.0
        %307 = vmatpush1.msra.mxu0 0.0
        %308 = vmatprep.subr.mxu0 0.0
        %309 = vmatpush1.msra.mxu0 0.0
        %310 = vmatprep.subr.mxu0 0.0
        %311 = vmatpush1.msra.mxu0 0.0
        %312 = vmatprep.subr.mxu0 0.0
        %313 = vmatpush1.msra.mxu0 0.0
        %314 = vmatprep.subr.mxu0 0.0
        %315 = vmatpush1.msra.mxu0 0.0
        %316 = vmatprep.subr.mxu0 0.0
        %317 = vmatpush1.msra.mxu0 0.0
        %318 = vmatprep.subr.mxu0 0.0
        %319 = vmatpush1.msra.mxu0 0.0
        %320 = vmatprep.subr.mxu0 0.0
        %321 = vmatpush1.msra.mxu0 0.0
        %322 = vmatprep.subr.mxu0 0.0
        %323 = vmatpush1.msra.mxu0 0.0
        %324 = vmatprep.subr.mxu0 0.0
        %325 = vmatpush1.msra.mxu0 0.0
        %326 = vmatprep.subr.mxu0 0.0
        %327 = vmatpush1.msra.mxu0 0.0
        %328 = vmatprep.subr.mxu0 0.0
        %329 = vmatpush1.msra.mxu0 0.0
        %330 = vmatprep.subr.mxu0 0.0
        %331 = vmatpush1.msra.mxu0 0.0
        %332 = vmatprep.subr.mxu0 0.0
        %333 = vmatpush1.msra.mxu0 0.0
        %334 = vmatprep.subr.mxu0 0.0
        %335 = vmatpush1.msra.mxu0 0.0
        %336 = vmatprep.subr.mxu0 0.0
        %337 = vmatpush1.msra.mxu0 0.0
        %338 = vmatprep.subr.mxu0 0.0
        %339 = vmatpush1.msra.mxu0 0.0
        %340 = vmatprep.subr.mxu0 0.0
        %341 = vmatpush1.msra.mxu0 0.0
        %342 = vmatprep.subr.mxu0 0.0
        %343 = vmatpush1.msra.mxu0 0.0
        %344 = vmatprep.subr.mxu0 0.0
        %345 = vmatpush1.msra.mxu0 0.0
        %346 = vmatprep.subr.mxu0 0.0
        %347 = vmatpush1.msra.mxu0 0.0
        %348 = vmatprep.subr.mxu0 0.0
        %349 = vmatpush1.msra.mxu0 0.0
        %350 = vmatprep.subr.mxu0 0.0
        %351 = vmatpush1.msra.mxu0 0.0
        %352 = vmatprep.subr.mxu0 0.0
        %353 = vmatpush1.msra.mxu0 0.0
        %354 = vmatprep.subr.mxu0 0.0
        %355 = vmatpush1.msra.mxu0 0.0
        %356 = vmatprep.subr.mxu0 0.0
        %357 = vmatpush1.msra.mxu0 0.0
        %358 = vmatprep.mubr.f32.mxu0 0.0
        %359 = vmatmul.mubr.f32.gmra.mrb[0].mxu0 %v292
        %v360 = vpop.f32.mrb[0].mxu0
        %v361 = vadd.f32 %v288, %v360
        %v362 = vpop.f32.mrb[0].mxu0
        %363 = vdwg.mxu0
        %vm364 = vcmp.gt.f32.partialorder %v284, 0.0
        %v365 = vmul.f32 %v284, 0.2
        %v366 = vsel %vm364, %v284, %v365
        %367 = vrot.lane.b32.xlu0 %v366, 1
        %v368 = vpop.permute.xlu0 %367
        %v369 = vsel %vm276, 0.0, %v368
        %370 = vrot.lane.b32.xlu0 %v366, 127
        %v371 = vpop.permute.xlu0 %370
        %v372 = vsel %vm277, 0.0, %v371
        %374 = vset.pattern.permute.xlu0 0
        %375 = vperm.xlu0 %374, %v281
        %v376 = vpop.permute.xlu0 %375
        %vm378 = vcmask 195584
        %v380 = vsel %vm378, %v280, 0
        %382 = vmatprep.subr.mxu0 0.0
        %383 = vmatpush1.msra.mxu0 %v369
        %384 = vmatprep.subr.mxu0 0.0
        %385 = vmatpush1.msra.mxu0 %v366
        %386 = vmatprep.subr.mxu0 0.0
        %387 = vmatpush1.msra.mxu0 %v372
        %388 = vmatprep.subr.mxu0 0.0
        %389 = vmatpush1.msra.mxu0 0.0
        %390 = vmatprep.subr.mxu0 0.0
        %391 = vmatpush1.msra.mxu0 0.0
        %392 = vmatprep.subr.mxu0 0.0
        %393 = vmatpush1.msra.mxu0 0.0
        %394 = vmatprep.subr.mxu0 0.0
        %395 = vmatpush1.msra.mxu0 0.0
        %396 = vmatprep.subr.mxu0 0.0
        %397 = vmatpush1.msra.mxu0 0.0
        %398 = vmatprep.subr.mxu0 0.0
        %399 = vmatpush1.msra.mxu0 0.0
        %400 = vmatprep.subr.mxu0 0.0
        %401 = vmatpush1.msra.mxu0 0.0
        %402 = vmatprep.subr.mxu0 0.0
        %403 = vmatpush1.msra.mxu0 0.0
        %404 = vmatprep.subr.mxu0 0.0
        %405 = vmatpush1.msra.mxu0 0.0
        %406 = vmatprep.subr.mxu0 0.0
        %407 = vmatpush1.msra.mxu0 0.0
        %408 = vmatprep.subr.mxu0 0.0
        %409 = vmatpush1.msra.mxu0 0.0
        %410 = vmatprep.subr.mxu0 0.0
        %411 = vmatpush1.msra.mxu0 0.0
        %412 = vmatprep.subr.mxu0 0.0
        %413 = vmatpush1.msra.mxu0 0.0
        %414 = vmatprep.subr.mxu0 0.0
        %415 = vmatpush1.msra.mxu0 0.0
        %416 = vmatprep.subr.mxu0 0.0
        %417 = vmatpush1.msra.mxu0 0.0
        %418 = vmatprep.subr.mxu0 0.0
        %419 = vmatpush1.msra.mxu0 0.0
        %420 = vmatprep.subr.mxu0 0.0
        %421 = vmatpush1.msra.mxu0 0.0
        %422 = vmatprep.subr.mxu0 0.0
        %423 = vmatpush1.msra.mxu0 0.0
        %424 = vmatprep.subr.mxu0 0.0
        %425 = vmatpush1.msra.mxu0 0.0
        %426 = vmatprep.subr.mxu0 0.0
        %427 = vmatpush1.msra.mxu0 0.0
        %428 = vmatprep.subr.mxu0 0.0
        %429 = vmatpush1.msra.mxu0 0.0
        %430 = vmatprep.subr.mxu0 0.0
        %431 = vmatpush1.msra.mxu0 0.0
        %432 = vmatprep.subr.mxu0 0.0
        %433 = vmatpush1.msra.mxu0 0.0
        %434 = vmatprep.subr.mxu0 0.0
        %435 = vmatpush1.msra.mxu0 0.0
        %436 = vmatprep.subr.mxu0 0.0
        %437 = vmatpush1.msra.mxu0 0.0
        %438 = vmatprep.subr.mxu0 0.0
        %439 = vmatpush1.msra.mxu0 0.0
        %440 = vmatprep.subr.mxu0 0.0
        %441 = vmatpush1.msra.mxu0 0.0
        %442 = vmatprep.subr.mxu0 0.0
        %443 = vmatpush1.msra.mxu0 0.0
        %444 = vmatprep.subr.mxu0 0.0
        %445 = vmatpush1.msra.mxu0 0.0
        %446 = vmatprep.mubr.f32.mxu0 0.0
        %447 = vmatmul.mubr.f32.gmra.mrb[0].mxu0 %v380
        %v448 = vpop.f32.mrb[0].mxu0
        %v449 = vadd.f32 %v376, %v448
        %v450 = vpop.f32.mrb[0].mxu0
        %451 = vdwg.mxu0
        %vm452 = vcmp.gt.f32.partialorder %v449, 0.0
        %v453 = vmul.f32 %v449, 0.2
        %v454 = vsel %vm452, %v449, %v453
        %455 = vrot.lane.b32.xlu0 %v454, 1
        %v456 = vpop.permute.xlu0 %455
        %v457 = vsel %vm276, 0.0, %v456
        %458 = vrot.lane.b32.xlu0 %v454, 127
        %v459 = vpop.permute.xlu0 %458
        %v460 = vsel %vm277, 0.0, %v459
        %462 = vset.pattern.permute.xlu0 0
        %463 = vperm.xlu0 %462, %v283
        %v464 = vpop.permute.xlu0 %463
        %v467 = vsel %vm378, %v282, 0
        %469 = vmatprep.subr.mxu0 0.0
        %470 = vmatpush1.msra.mxu0 %v457
        %471 = vmatprep.subr.mxu0 0.0
        %472 = vmatpush1.msra.mxu0 %v454
        %473 = vmatprep.subr.mxu0 0.0
        %474 = vmatpush1.msra.mxu0 %v460
        %475 = vmatprep.subr.mxu0 0.0
        %476 = vmatpush1.msra.mxu0 0.0
        %477 = vmatprep.subr.mxu0 0.0
        %478 = vmatpush1.msra.mxu0 0.0
        %479 = vmatprep.subr.mxu0 0.0
        %480 = vmatpush1.msra.mxu0 0.0
        %481 = vmatprep.subr.mxu0 0.0
        %482 = vmatpush1.msra.mxu0 0.0
        %483 = vmatprep.subr.mxu0 0.0
        %484 = vmatpush1.msra.mxu0 0.0
        %485 = vmatprep.subr.mxu0 0.0
        %486 = vmatpush1.msra.mxu0 0.0
        %487 = vmatprep.subr.mxu0 0.0
        %488 = vmatpush1.msra.mxu0 0.0
        %489 = vmatprep.subr.mxu0 0.0
        %490 = vmatpush1.msra.mxu0 0.0
        %491 = vmatprep.subr.mxu0 0.0
        %492 = vmatpush1.msra.mxu0 0.0
        %493 = vmatprep.subr.mxu0 0.0
        %494 = vmatpush1.msra.mxu0 0.0
        %495 = vmatprep.subr.mxu0 0.0
        %496 = vmatpush1.msra.mxu0 0.0
        %497 = vmatprep.subr.mxu0 0.0
        %498 = vmatpush1.msra.mxu0 0.0
        %499 = vmatprep.subr.mxu0 0.0
        %500 = vmatpush1.msra.mxu0 0.0
        %501 = vmatprep.subr.mxu0 0.0
        %502 = vmatpush1.msra.mxu0 0.0
        %503 = vmatprep.subr.mxu0 0.0
        %504 = vmatpush1.msra.mxu0 0.0
        %505 = vmatprep.subr.mxu0 0.0
        %506 = vmatpush1.msra.mxu0 0.0
        %507 = vmatprep.subr.mxu0 0.0
        %508 = vmatpush1.msra.mxu0 0.0
        %509 = vmatprep.subr.mxu0 0.0
        %510 = vmatpush1.msra.mxu0 0.0
        %511 = vmatprep.subr.mxu0 0.0
        %512 = vmatpush1.msra.mxu0 0.0
        %513 = vmatprep.subr.mxu0 0.0
        %514 = vmatpush1.msra.mxu0 0.0
        %515 = vmatprep.subr.mxu0 0.0
        %516 = vmatpush1.msra.mxu0 0.0
        %517 = vmatprep.subr.mxu0 0.0
        %518 = vmatpush1.msra.mxu0 0.0
        %519 = vmatprep.subr.mxu0 0.0
        %520 = vmatpush1.msra.mxu0 0.0
        %521 = vmatprep.subr.mxu0 0.0
        %522 = vmatpush1.msra.mxu0 0.0
        %523 = vmatprep.subr.mxu0 0.0
        %524 = vmatpush1.msra.mxu0 0.0
        %525 = vmatprep.subr.mxu0 0.0
        %526 = vmatpush1.msra.mxu0 0.0
        %527 = vmatprep.subr.mxu0 0.0
        %528 = vmatpush1.msra.mxu0 0.0
        %529 = vmatprep.subr.mxu0 0.0
        %530 = vmatpush1.msra.mxu0 0.0
        %531 = vmatprep.subr.mxu0 0.0
        %532 = vmatpush1.msra.mxu0 0.0
        %533 = vmatprep.mubr.f32.mxu0 0.0
        %534 = vmatmul.mubr.f32.gmra.mrb[0].mxu0 %v467
        %v535 = vpop.f32.mrb[0].mxu0
        %v536 = vadd.f32 %v464, %v535
        %v537 = vpop.f32.mrb[0].mxu0
        %538 = vdwg.mxu0
        %v539 = vadd.f32 %v536, %v361
        %540 = vst [vmem:[%s269] sm:$0xff] %v539
        %s541 = sand.u32 %s181, 1
        %s542 = scalar_lea.sflag [#allocation3], %s541
        %s543 = sand.u32 %s181, 1
        %s544 = smul.addr %s543, 8
        %s545 = scalar_lea.vmem [#allocation2], %s544
        // Predicated region
        $region49: #{tpu_custom_call.1} parent=47 // pred_check
          %p546 = pneg %p191
        $region50: #{tpu_custom_call.1} parent=47 // pred_check_branch
          %548 = sbr.rel (%p546) target = $region52
        $region51: #{tpu_custom_call.1} parent=47 // pred_region
          %s550 = ssub.s32 128, 128
          %551 = vsyncadd %s542, %s550
          %s552 = smul.addr %s21, 128
          %s553 = scalar_lea.hbm %s7, %s552
          %s555 = sshll.u32 %s545, 4
          %s556 = int_to_ptr.vmem [resolvable:$true] %s555
          %558 = dma.vmem_to_hbm [thread:$0]  %s556, 128, %s553, %s542
        $region52: #{tpu_custom_call.1} parent=47 // pred_fallthru
          _
      $region48: #{tpu_custom_call.1} parent=5 // pred_fallthru
        _
      %p559 = scmp.le.s32.totalorder 2, %s16
      // Predicated region
      $region53: #{tpu_custom_call.1} parent=5 // pred_check
        %p560 = pneg %p559
      $region54: #{tpu_custom_call.1} parent=5 // pred_check_branch
        %562 = sbr.rel (%p560) target = $region56
      $region55: #{tpu_custom_call.1} parent=5 // pred_region
        %s563 = ssub.s32 %s16, 2
        // Predicated region
        $region57: #{tpu_custom_call.1} parent=55 // pred_check
          %p564 = pneg %p197
        $region58: #{tpu_custom_call.1} parent=55 // pred_check_branch
          %566 = sbr.rel (%p564) target = $region60
        $region59: #{tpu_custom_call.1} parent=55 // pred_region
          %s567 = sand.u32 %s182, 1
          %s568 = scalar_lea.sflag [#allocation3], %s567
          %s569 = sand.u32 %s182, 1
          %s570 = smul.addr %s569, 8
          %s571 = scalar_lea.vmem [#allocation2], %s570
          %572 = dma.done %s568, 128
        $region60: #{tpu_custom_call.1} parent=55 // pred_fallthru
          _
      $region56: #{tpu_custom_call.1} parent=5 // pred_fallthru
        _
    $region6: #{tpu_custom_call.1} parent=1 // loop_footer
      %s20 = sadd.s32 1, %s16
    $region7: #{tpu_custom_call.1} parent=1 // loop_footer_branch
      %15 = sbr.rel target = $region3
    $region8: #{tpu_custom_call.1} parent=1 // loop_exit
      _
    %573 = vsyncpa [#allocation3], 1
    %s574 = scalar_lea.sflag [#allocation3], 1
    %575 = vsyncpa %s574, 1

</llo_original>
